<compile_context>
chip_gen: v7x
topology: tpu7x:2x2x1
jax: 0.10.0
libtpu: 0.0.40
codegen_flags: <defaults>
</compile_context>

<pallas_src>
import functools

import jax
import jax.numpy as jnp
from jax.experimental import pallas as pl
from jax.experimental.pallas import tpu as pltpu


def _patch_scatter_kernel(GW, P, inv_ref, x_ref, o_ref):
    """One source patch (b, gh, gw=j) per grid step.

    inv_ref : SMEM int32[N]   inverse permutation (scalar prefetch; consumed
                              only by the output index_map).
    x_ref   : VMEM [C, P, W]  row strip (b, gh) of the image; its block index
                              does not depend on the inner grid axis, so it
                              is DMA'd once and reused for GW steps.
    o_ref   : VMEM [C, P, P]  dense destination patch block; its row is
                              chosen data-dependently by the output index_map.
    """
    del inv_ref  # used only by the output index_map
    j = pl.program_id(2)
    # GW is a small static constant: unroll the column selection with static
    # P-aligned lane slices guarded by pl.when (exactly one branch fires).
    for jj in range(GW):
        @pl.when(j == jj)
        def _(jj=jj):
            o_ref[...] = x_ref[:, :, jj * P:(jj + 1) * P]


def cyclegan_patch_extract(x, perm, patch_size):
    """Equivalent of CycleGANTransform.forward (minus the discarded kornia op)."""
    # TODO(synk): self.transform_op (kornia RandomCrop/flips) is dead code in
    # the reference forward (its result is overwritten) -> not implemented.
    B, C, H, W = x.shape
    P = patch_size
    GH, GW = H // P, W // P
    N = B * GH * GW

    # stride == window drops any remainder rows/cols (matches the reference).
    Hc, Wc = GH * P, GW * P
    x = x[:, :, :Hc, :Wc]

    # The row-strip input block (None, C, P, Wc) needs its second-minor dim P
    # to satisfy the sublane constraint (multiple of 8, or the full dim).
    # TODO(synk): fall back to a 6-D sublane-select layout for exotic P.
    assert P % 8 == 0 or P == Hc, "patch_size must be a multiple of 8"

    # out[n] = patch[perm[n]]  <=>  source patch s goes to output row inv[s]
    # (valid because perm is a bijection, as torch.randperm guarantees).
    inv_perm = jnp.argsort(perm).astype(jnp.int32)

    kernel = functools.partial(_patch_scatter_kernel, GW, P)
    nbytes = x.size * x.dtype.itemsize

    out = pl.pallas_call(
        kernel,
        out_shape=jax.ShapeDtypeStruct((N, C, P, P), x.dtype),
        grid_spec=pltpu.PrefetchScalarGridSpec(
            num_scalar_prefetch=1,                  # inv_perm -> SMEM
            grid=(B, GH, GW),
            in_specs=[
                pl.BlockSpec(
                    (None, C, P, Wc),               # lane-dense row strip
                    lambda b, g, j, inv: (b, 0, g, 0),
                ),
            ],
            out_specs=pl.BlockSpec(
                (None, C, P, P),                    # dense patch block
                lambda b, g, j, inv: (inv[(b * GH + g) * GW + j], 0, 0, 0),
            ),
        ),
        compiler_params=pltpu.CompilerParams(
            dimension_semantics=("parallel", "parallel", "arbitrary")),
        cost_estimate=pl.CostEstimate(
            flops=0, transcendentals=0, bytes_accessed=2 * nbytes),
    )(inv_perm, x)

    return out


if __name__ == "__main__":
    key = jax.random.PRNGKey(0)
    kx, kp = jax.random.split(key)

    B, C, H, W = 2, 4, 16, 16
    patch_size = 8
    GH, GW = H // patch_size, W // patch_size
    N = B * GH * GW

    x = jax.random.normal(kx, (B, C, H, W), dtype=jnp.float32)
    # torch.randperm(out_tensor_size) equivalent, made deterministic.
    perm = jax.random.permutation(kp, N).astype(jnp.int32)

    out = cyclegan_patch_extract(x, perm, patch_size)
    out = jax.block_until_ready(out)

    # Pure-JAX reference: ExtractTensorPatches(window=stride=P) -> flatten -> gather.
    ref = x.reshape(B, C, GH, patch_size, GW, patch_size)
    ref = ref.transpose(0, 2, 4, 1, 3, 5).reshape(N, C, patch_size, patch_size)
    ref = ref[perm]

    assert out.shape == (N, C, patch_size, patch_size)
    assert out.dtype == x.dtype
    assert jnp.allclose(out, ref)
    print("KERNEL_OK")
</pallas_src>

<mosaic_0001>
module attributes {stable_mosaic.version = 11 : i64} {
  func.func @_patch_scatter_kernel(%arg0: i32, %arg1: i32, %arg2: i32, %arg3: memref<8xi32, #tpu.memory_space<smem>>, %arg4: memref<1x4x8x16xf32, #tpu.memory_space<vmem>>, %arg5: memref<1x4x8x8xf32, #tpu.memory_space<vmem>>) attributes {dimension_semantics = [#tpu.dimension_semantics<parallel>, #tpu.dimension_semantics<parallel>, #tpu.dimension_semantics<arbitrary>], iteration_bounds = array<i64: 2, 2, 2>, scalar_prefetch = 1 : i64, scratch_operands = 0 : i64, tpu.core_type = #tpu.core_type<tc>, window_params = [{transform_indices = @transform_0, window_bounds = array<i64: 1, 4, 8, 16>}, {transform_indices = @transform_1, window_bounds = array<i64: 1, 4, 8, 8>}]} {
    %c0_i32 = arith.constant 0 : i32
    %0 = arith.cmpi eq, %arg2, %c0_i32 : i32
    %1 = arith.extui %0 : i1 to i32
    %c0_i32_0 = arith.constant 0 : i32
    %2 = arith.cmpi ne, %1, %c0_i32_0 : i32
    scf.if %2 {
      %c0 = arith.constant 0 : index
      %c0_2 = arith.constant 0 : index
      %c0_3 = arith.constant 0 : index
      %c0_4 = arith.constant 0 : index
      %6 = vector.load %arg4[%c0, %c0_2, %c0_3, %c0_4] : memref<1x4x8x16xf32, #tpu.memory_space<vmem>>, vector<1x4x8x8xf32>
      %7 = vector.shape_cast %6 : vector<1x4x8x8xf32> to vector<4x8x8xf32>
      %c0_5 = arith.constant 0 : index
      %c0_6 = arith.constant 0 : index
      %c0_7 = arith.constant 0 : index
      %c0_8 = arith.constant 0 : index
      %8 = vector.load %arg5[%c0_5, %c0_6, %c0_7, %c0_8] : memref<1x4x8x8xf32, #tpu.memory_space<vmem>>, vector<1x4x8x8xf32>
      %9 = vector.shape_cast %8 : vector<1x4x8x8xf32> to vector<4x8x8xf32>
      %10 = vector.shape_cast %7 : vector<4x8x8xf32> to vector<1x4x8x8xf32>
      tpu.vector_store %arg5[%c0_5, %c0_6, %c0_7, %c0_8], %10 {strides = array<i32>} : memref<1x4x8x8xf32, #tpu.memory_space<vmem>>, vector<1x4x8x8xf32>,
    } else {
    }
    %c1_i32 = arith.constant 1 : i32
    %3 = arith.cmpi eq, %arg2, %c1_i32 : i32
    %4 = arith.extui %3 : i1 to i32
    %c0_i32_1 = arith.constant 0 : i32
    %5 = arith.cmpi ne, %4, %c0_i32_1 : i32
    scf.if %5 {
      %c0 = arith.constant 0 : index
      %c0_2 = arith.constant 0 : index
      %c0_3 = arith.constant 0 : index
      %c8 = arith.constant 8 : index
      %6 = vector.load %arg4[%c0, %c0_2, %c0_3, %c8] : memref<1x4x8x16xf32, #tpu.memory_space<vmem>>, vector<1x4x8x8xf32>
      %7 = vector.shape_cast %6 : vector<1x4x8x8xf32> to vector<4x8x8xf32>
      %c0_4 = arith.constant 0 : index
      %c0_5 = arith.constant 0 : index
      %c0_6 = arith.constant 0 : index
      %c0_7 = arith.constant 0 : index
      %8 = vector.load %arg5[%c0_4, %c0_5, %c0_6, %c0_7] : memref<1x4x8x8xf32, #tpu.memory_space<vmem>>, vector<1x4x8x8xf32>
      %9 = vector.shape_cast %8 : vector<1x4x8x8xf32> to vector<4x8x8xf32>
      %10 = vector.shape_cast %7 : vector<4x8x8xf32> to vector<1x4x8x8xf32>
      tpu.vector_store %arg5[%c0_4, %c0_5, %c0_6, %c0_7], %10 {strides = array<i32>} : memref<1x4x8x8xf32, #tpu.memory_space<vmem>>, vector<1x4x8x8xf32>,
    } else {
    }
    return
  }
  func.func @transform_0(%arg0: i32, %arg1: i32, %arg2: i32, %arg3: memref<8xi32, #tpu.memory_space<smem>>) -> (i32, i32, i32, i32) {
    %c0_i32 = arith.constant 0 : i32
    %c0_i32_0 = arith.constant 0 : i32
    %c0_i32_1 = arith.constant 0 : i32
    return %arg0, %c0_i32, %arg1, %c0_i32_0 : i32, i32, i32, i32
  }
  func.func @transform_1(%arg0: i32, %arg1: i32, %arg2: i32, %arg3: memref<8xi32, #tpu.memory_space<smem>>) -> (i32, i32, i32, i32) {
    %c2_i32 = arith.constant 2 : i32
    %0 = arith.muli %arg0, %c2_i32 : i32
    %1 = arith.addi %0, %arg1 : i32
    %c2_i32_0 = arith.constant 2 : i32
    %2 = arith.muli %1, %c2_i32_0 : i32
    %3 = arith.addi %2, %arg2 : i32
    %4 = arith.index_cast %3 : i32 to index
    %5 = memref.load %arg3[%4] : memref<8xi32, #tpu.memory_space<smem>>
    %c0_i32 = arith.constant 0 : i32
    %c0_i32_1 = arith.constant 0 : i32
    %c0_i32_2 = arith.constant 0 : i32
    %c0_i32_3 = arith.constant 0 : i32
    return %5, %c0_i32, %c0_i32_1, %c0_i32_2 : i32, i32, i32, i32
  }
}

</mosaic_0001>

<llo_original>
// kernel: tpu_custom_call.1
$region0: #{tpu_custom_call.1}
  #allocation0 [shape = 'u32[]', space=smem, size = 0x4, offset = 0x4, fixed_abs, tag = 'smem constant byte address 0x4 - core index']
  #allocation1 [shape = 'u32[144,128]{1,0:T(1,128)}', space=vmem, size = 0x12000, scoped, tag = 'internal scratch']
  #allocation2 [shape = 's32[1]{0}', space=sflag, size = 0x4, scoped, tag = 'scoped memory for tpu_custom_call.1']
  #allocation3 [shape = 'u8[512]{0}', space=smem, size = 0x200, scoped, tag = 'prefetched SMEM operand 0']
  %s0 = inlined_call_operand.hbm [shape: s32[8], index: 0, kind: input, shape index: {}]
  %s1 = inlined_call_operand.hbm [shape: f32[2,4,16,16], index: 1, kind: input, shape index: {}]
  %s2 = inlined_call_operand.hbm [shape: f32[8,4,8,8], index: 2, kind: output, shape index: {}]
  %s3 = sld [smem:[#allocation0]]
  $region49: #{tpu_custom_call.1} parent=0
    _
  %s5 = ssub.s32 1, %s3
  %s6 = scalar_select 0, %s5, %s3
  %8 = dma.hbm_to_smem %s0, 16, [#allocation3], [#allocation2]
  %9 = dma.done [#allocation2], 16
  %10 = sfence
  $region1: #{tpu_custom_call.1} parent=0
    #allocation4 [shape = 'u8[32768]{0}', space=vmem, size = 0x8000, scoped, tag = 'input window, operand 1']
    #allocation5 [shape = 's32[2]{0}', space=sflag, size = 0x8, scoped, tag = 'scoped memory for tpu_custom_call.1']
    #allocation6 [shape = 's32[2]{0}', space=sflag, size = 0x8, scoped, tag = 'scoped memory for tpu_custom_call.1']
    #allocation7 [shape = 'u8[32768]{0}', space=vmem, size = 0x8000, scoped, tag = 'output window, operand 0']
    %11 = vsyncpa [#allocation5], 0
    %s12 = scalar_lea.sflag [#allocation5], 1
    %13 = vsyncpa %s12, 0
    %14 = vsyncpa [#allocation6], 0
    %s15 = scalar_lea.sflag [#allocation6], 1
    %16 = vsyncpa %s15, 0
    loop: start=0, step=1, limit=10
    $region2: #{tpu_custom_call.1} parent=1 // loop_pre_header
      _
    $region3: #{tpu_custom_call.1} parent=1 // loop_header
      %s18 = sphi 0, %s22
      %p19 = scmp.ge.s32.totalorder %s18, 10
      %s25 = sphi 0, %s44
      %s26 = sphi 0, %s40
      %s27 = sphi 0, %s36
      %s28 = sphi 0, %s25
      %s29 = sphi 0, %s26
      %s30 = sphi 0, %s27
      %s31 = sphi 0, %s28
      %s32 = sphi 0, %s29
      %s33 = sphi 0, %s30
      %s49 = sphi 0, %s51
      %s52 = sphi 0, %s49
      %s53 = sphi 0, %s52
      %s69 = sphi 0, %s53
      %s85 = sphi 0, %s87
      %s88 = sphi 0, %s85
      %s89 = sphi 0, %s88
      %s105 = sphi 0, %s89
    $region4: #{tpu_custom_call.1} parent=1 // loop_header_branch
      %21 = sbr.rel (%p19) target = $region8
    $region5: #{tpu_custom_call.1} parent=1 // loop_body
      %s23 = ssub.s32 %s18, 1
      %s24 = ssub.s32 %s18, 2
      %s34 = sadd.s32 1, %s27
      %p35 = scmp.ge.s32.totalorder %s34, 2
      %s36 = scalar_select %p35, 0, %s34
      %s37 = sadd.s32 1, %s26
      %s38 = scalar_select %p35, %s37, %s26
      %p39 = scmp.ge.s32.totalorder %s38, 2
      %s40 = scalar_select %p39, 0, %s38
      %s41 = sadd.s32 1, %s25
      %s42 = scalar_select %p39, %s41, %s25
      %p43 = scmp.ge.s32.totalorder %s42, 2
      %s44 = scalar_select %p43, 0, %s42
      %s45 = ssub.s32 %s25, %s44
      %s46 = ssub.s32 %s26, %s40
      %s47 = sor.u32 %s45, %s46
      %p48 = scmp.eq.s32.totalorder %s47, 0
      %s50 = sadd.s32 %s49, 1
      %s51 = scalar_select %p48, %s49, %s50
      %p54 = pneg %p48
      %p55 = scmp.eq.s32.totalorder %s18, 7
      %p56 = por %p54, %p55
      %p57 = scmp.ne.s32.totalorder %s49, %s52
      %p58 = scmp.eq.s32.totalorder %s18, 0
      %p59 = por %p57, %p58
      %p60 = scmp.ne.s32.totalorder %s49, %s52
      %p61 = scmp.eq.s32.totalorder %s23, 7
      %p62 = por %p60, %p61
      %p63 = scmp.ne.s32.totalorder %s52, %s53
      %p64 = scmp.eq.s32.totalorder %s23, 0
      %p65 = por %p63, %p64
      %p66 = scmp.ne.s32.totalorder %s52, %s53
      %p67 = scmp.eq.s32.totalorder %s24, 7
      %p68 = por %p66, %p67
      %p70 = scmp.ne.s32.totalorder %s53, %s69
      %p71 = scmp.eq.s32.totalorder %s24, 0
      %p72 = por %p70, %p71
      %s73 = smul.u32 %s25, 2
      %s74 = sadd.s32 %s73, %s26
      %s75 = smul.u32 %s74, 2
      %s76 = sadd.s32 %s75, %s27
      %s77 = sld [smem:[#allocation3 + %s76]]
      %s78 = smul.u32 %s44, 2
      %s79 = sadd.s32 %s78, %s40
      %s80 = smul.u32 %s79, 2
      %s81 = sadd.s32 %s80, %s36
      %s82 = sld [smem:[#allocation3 + %s81]]
      %s83 = ssub.s32 %s77, %s82
      %p84 = scmp.eq.s32.totalorder %s83, 0
      %s86 = sadd.s32 %s85, 1
      %s87 = scalar_select %p84, %s85, %s86
      %p90 = pneg %p84
      %p91 = scmp.eq.s32.totalorder %s18, 7
      %p92 = por %p90, %p91
      %p93 = scmp.ne.s32.totalorder %s85, %s88
      %p94 = scmp.eq.s32.totalorder %s18, 0
      %p95 = por %p93, %p94
      %p96 = scmp.ne.s32.totalorder %s85, %s88
      %p97 = scmp.eq.s32.totalorder %s23, 7
      %p98 = por %p96, %p97
      %p99 = scmp.ne.s32.totalorder %s88, %s89
      %p100 = scmp.eq.s32.totalorder %s23, 0
      %p101 = por %p99, %p100
      %p102 = scmp.ne.s32.totalorder %s88, %s89
      %p103 = scmp.eq.s32.totalorder %s24, 7
      %p104 = por %p102, %p103
      %p106 = scmp.ne.s32.totalorder %s89, %s105
      %p107 = scmp.eq.s32.totalorder %s24, 0
      %p108 = por %p106, %p107
      %p109 = scmp.le.s32.totalorder 1, %s18
      %p110 = scmp.lt.s32.totalorder %s18, 9
      %p111 = pnand %p109, %p110
      %p112 = pneg %p111
      // Predicated region
      $region9: #{tpu_custom_call.1} parent=5 // pred_check
        _
      $region10: #{tpu_custom_call.1} parent=5 // pred_check_branch
        %114 = sbr.rel (%p111) target = $region12
      $region11: #{tpu_custom_call.1} parent=5 // pred_region
        %s115 = ssub.s32 %s18, 1
      $region12: #{tpu_custom_call.1} parent=5 // pred_fallthru
        _
      %p116 = scmp.lt.s32.totalorder %s18, 8
      // Predicated region
      $region13: #{tpu_custom_call.1} parent=5 // pred_check
        %p117 = pneg %p116
      $region14: #{tpu_custom_call.1} parent=5 // pred_check_branch
        %119 = sbr.rel (%p117) target = $region16
      $region15: #{tpu_custom_call.1} parent=5 // pred_region
        // Predicated region
        $region17: #{tpu_custom_call.1} parent=15 // pred_check
          %p120 = pneg %p59
        $region18: #{tpu_custom_call.1} parent=15 // pred_check_branch
          %122 = sbr.rel (%p120) target = $region20
        $region19: #{tpu_custom_call.1} parent=15 // pred_region
          %s123 = sand.u32 %s49, 1
          %s124 = scalar_lea.sflag [#allocation5], %s123
          %s125 = sand.u32 %s49, 1
          %s126 = smul.addr %s125, 32
          %s127 = scalar_lea.vmem [#allocation4], %s126
          %s129 = ssub.s32 512, 512
          %130 = vsyncadd %s124, %s129
          %s131 = smul.addr %s25, 8
          %s132 = sadd.s32 %s26, %s131
          %s133 = smul.addr %s132, 128
          %s134 = scalar_lea.hbm %s1, %s133
          %s135 = sshll.u32 %s127, 4
          %s136 = int_to_ptr.vmem [resolvable:$true] %s135
          %141 = dma.hbm_to_vmem [thread:$0]  %s134, 512, %s136, %s124, 256, 128, 8
        $region20: #{tpu_custom_call.1} parent=15 // pred_fallthru
          _
      $region16: #{tpu_custom_call.1} parent=5 // pred_fallthru
        _
      %p142 = scmp.le.s32.totalorder 1, %s18
      %p143 = scmp.lt.s32.totalorder %s18, 9
      %p144 = pnand %p142, %p143
      %p145 = pneg %p144
      // Predicated region
      $region21: #{tpu_custom_call.1} parent=5 // pred_check
        _
      $region22: #{tpu_custom_call.1} parent=5 // pred_check_branch
        %147 = sbr.rel (%p144) target = $region24
      $region23: #{tpu_custom_call.1} parent=5 // pred_region
        %s148 = ssub.s32 %s18, 1
        %s149 = sand.u32 %s52, 1
        %s150 = scalar_lea.sflag [#allocation5], %s149
        %s151 = sand.u32 %s52, 1
        %s152 = smul.addr %s151, 32
        %s153 = scalar_lea.vmem [#allocation4], %s152
        // Predicated region
        $region25: #{tpu_custom_call.1} parent=23 // pred_check
          %p154 = pneg %p65
        $region26: #{tpu_custom_call.1} parent=23 // pred_check_branch
          %156 = sbr.rel (%p154) target = $region28
        $region27: #{tpu_custom_call.1} parent=23 // pred_region
          %157 = dma.done %s150, 512
        $region28: #{tpu_custom_call.1} parent=23 // pred_fallthru
          _
        %s158 = sand.u32 %s52, 1
        %s159 = scalar_lea.sflag [#allocation5], %s158
        %s160 = sand.u32 %s52, 1
        %s161 = smul.addr %s160, 32
        %s162 = scalar_lea.vmem [#allocation4], %s161
        %p163 = pneg %p65
        %p164 = pneg %p62
        %p165 = pneg %p101
        %p166 = pneg %p98
        %s167 = sand.u32 %s88, 1
        %s168 = scalar_lea.sflag [#allocation6], %s167
        %s169 = sand.u32 %s88, 1
        %s170 = smul.addr %s169, 32
        %s171 = scalar_lea.vmem [#allocation7], %s170
        %s172 = smul.u32 %s28, 2
        %s173 = sadd.s32 %s172, %s29
        %s174 = smul.u32 %s173, 2
        %s175 = sadd.s32 %s174, %s30
        %s176 = sld [smem:[#allocation3 + %s175]]
        %p177 = scmp.eq.s32.totalorder %s30, 0
        // Predicated region
        $region29: #{tpu_custom_call.1} parent=23 // pred_check
          %p178 = pneg %p177
        $region30: #{tpu_custom_call.1} parent=23 // pred_check_branch
          %180 = sbr.rel (%p178) target = $region32
        $region31: #{tpu_custom_call.1} parent=23 // pred_region
          %v181 = vld [vmem:[%s153] sm:$0xff]
          %v182 = vld [vmem:[%s153 + $0x8] sm:$0xff]
          %v183 = vld [vmem:[%s153 + $0x10] sm:$0xff]
          %v184 = vld [vmem:[%s153 + $0x18] sm:$0xff]
          %vm185 = vcmask 64512
          %186 = vst.msk [vmem:[%s171] sm:$0xff] %vm185, %v181
          %187 = vst.msk [vmem:[%s171 + $0x8] sm:$0xff] %vm185, %v182
          %188 = vst.msk [vmem:[%s171 + $0x10] sm:$0xff] %vm185, %v183
          %189 = vst.msk [vmem:[%s171 + $0x18] sm:$0xff] %vm185, %v184
        $region32: #{tpu_custom_call.1} parent=23 // pred_fallthru
          _
        %p190 = scmp.eq.s32.totalorder %s30, 1
        // Predicated region
        $region33: #{tpu_custom_call.1} parent=23 // pred_check
          %p191 = pneg %p190
        $region34: #{tpu_custom_call.1} parent=23 // pred_check_branch
          %193 = sbr.rel (%p191) target = $region36
        $region35: #{tpu_custom_call.1} parent=23 // pred_region
          %v194 = vld [vmem:[%s153] sm:$0xff]
          %v195 = vld [vmem:[%s153 + $0x8] sm:$0xff]
          %v196 = vld [vmem:[%s153 + $0x10] sm:$0xff]
          %v197 = vld [vmem:[%s153 + $0x18] sm:$0xff]
          %202 = vrot.lane.b32.xlu0 %v194, 120
          %v203 = vpop.permute.xlu0 %202
          %204 = vrot.lane.b32.xlu0 %v195, 120
          %v205 = vpop.permute.xlu0 %204
          %206 = vrot.lane.b32.xlu0 %v196, 120
          %v207 = vpop.permute.xlu0 %206
          %208 = vrot.lane.b32.xlu0 %v197, 120
          %v209 = vpop.permute.xlu0 %208
          %vm214 = vcmask 64512
          %215 = vst.msk [vmem:[%s171] sm:$0xff] %vm214, %v203
          %216 = vst.msk [vmem:[%s171 + $0x8] sm:$0xff] %vm214, %v205
          %217 = vst.msk [vmem:[%s171 + $0x10] sm:$0xff] %vm214, %v207
          %218 = vst.msk [vmem:[%s171 + $0x18] sm:$0xff] %vm214, %v209
        $region36: #{tpu_custom_call.1} parent=23 // pred_fallthru
          _
        %s219 = sand.u32 %s88, 1
        %s220 = scalar_lea.sflag [#allocation6], %s219
        %s221 = sand.u32 %s88, 1
        %s222 = smul.addr %s221, 32
        %s223 = scalar_lea.vmem [#allocation7], %s222
        // Predicated region
        $region37: #{tpu_custom_call.1} parent=23 // pred_check
          %p224 = pneg %p98
        $region38: #{tpu_custom_call.1} parent=23 // pred_check_branch
          %226 = sbr.rel (%p224) target = $region40
        $region39: #{tpu_custom_call.1} parent=23 // pred_region
          %s227 = smul.u32 %s28, 2
          %s228 = sadd.s32 %s227, %s29
          %s229 = smul.u32 %s228, 2
          %s230 = sadd.s32 %s229, %s30
          %s231 = sld [smem:[#allocation3 + %s230]]
          %s233 = ssub.s32 512, 512
          %234 = vsyncadd %s220, %s233
          %s235 = smul.addr %s231, 4
          %s236 = smul.addr %s235, 128
          %s237 = scalar_lea.hbm %s2, %s236
          %s238 = sshll.u32 %s223, 4
          %s239 = int_to_ptr.vmem [resolvable:$true] %s238
          %244 = dma.vmem_to_hbm [thread:$0]  %s239, 512, %s237, %s220, 128, 128, 8
        $region40: #{tpu_custom_call.1} parent=23 // pred_fallthru
          _
      $region24: #{tpu_custom_call.1} parent=5 // pred_fallthru
        _
      %p245 = scmp.le.s32.totalorder 2, %s18
      // Predicated region
      $region41: #{tpu_custom_call.1} parent=5 // pred_check
        %p246 = pneg %p245
      $region42: #{tpu_custom_call.1} parent=5 // pred_check_branch
        %248 = sbr.rel (%p246) target = $region44
      $region43: #{tpu_custom_call.1} parent=5 // pred_region
        %s249 = ssub.s32 %s18, 2
        // Predicated region
        $region45: #{tpu_custom_call.1} parent=43 // pred_check
          %p250 = pneg %p104
        $region46: #{tpu_custom_call.1} parent=43 // pred_check_branch
          %252 = sbr.rel (%p250) target = $region48
        $region47: #{tpu_custom_call.1} parent=43 // pred_region
          %s253 = sand.u32 %s89, 1
          %s254 = scalar_lea.sflag [#allocation6], %s253
          %s255 = sand.u32 %s89, 1
          %s256 = smul.addr %s255, 32
          %s257 = scalar_lea.vmem [#allocation7], %s256
          %258 = dma.done %s254, 512
        $region48: #{tpu_custom_call.1} parent=43 // pred_fallthru
          _
      $region44: #{tpu_custom_call.1} parent=5 // pred_fallthru
        _
    $region6: #{tpu_custom_call.1} parent=1 // loop_footer
      %s22 = sadd.s32 1, %s18
    $region7: #{tpu_custom_call.1} parent=1 // loop_footer_branch
      %17 = sbr.rel target = $region3
    $region8: #{tpu_custom_call.1} parent=1 // loop_exit
      _
    %259 = vsyncpa [#allocation5], 1
    %s260 = scalar_lea.sflag [#allocation5], 1
    %261 = vsyncpa %s260, 1
    %262 = vsyncpa [#allocation6], 1
    %s263 = scalar_lea.sflag [#allocation6], 1
    %264 = vsyncpa %s263, 1

</llo_original>
